<compile_context>
chip_gen: v5e
topology: v5e:2x2
jax: 0.10.0
libtpu: 0.0.40
codegen_flags: <defaults>
</compile_context>

<pallas_src>
import functools

import jax
import jax.numpy as jnp
from jax import lax
from jax.experimental import pallas as pl
from jax.experimental.pallas import tpu as pltpu

N_EMBD = 384          # module's n_embd
BLOCK_SIZE = 256      # module's registered tril buffer size (only [:T,:T] used)
LANES = 128           # TPU vreg lane width

_MASK_VALUE = -1e30   # finite "-inf" for the causal mask


def _head_kernel(x_ref, w_ref, o_ref, *, head_size):
    # x_ref: (Bb, T, C) block of the input
    # w_ref: (C, WP) fused [Wk | Wq*scale | Wv] packed into one lane slab
    # o_ref: (Bb, T, H) output block (H = head_size, full array dim)
    Bb, T, C = x_ref.shape
    H = head_size
    mm_dtype = x_ref.dtype  # bf16 fast path if inputs are bf16; f32 if f32

    # --- fused Q/K/V projection: one (Bb*T, C) @ (C, WP) matmul --------------
    x2 = x_ref[...].reshape(Bb * T, C)
    kqv = jnp.dot(x2, w_ref[...], preferred_element_type=jnp.float32)
    kqv = kqv.reshape(Bb, T, -1)

    # Lane sub-selects out of the single slab (scale is already folded into
    # the q columns of the fused weight).
    k = kqv[:, :, 0 * H:1 * H].astype(mm_dtype)
    q = kqv[:, :, 1 * H:2 * H].astype(mm_dtype)
    v = kqv[:, :, 2 * H:3 * H].astype(mm_dtype)

    # --- scores: contraction over head dim, no explicit transpose ------------
    s = jnp.einsum('bqh,bkh->bqk', q, k,
                   preferred_element_type=jnp.float32)          # (Bb, T, T)

    # Causal mask built once as (T, T), broadcast over the batch dim.
    row = lax.broadcasted_iota(jnp.int32, (T, T), 0)
    col = lax.broadcasted_iota(jnp.int32, (T, T), 1)
    causal = (col <= row)[None, :, :]
    s = jnp.where(causal, s, _MASK_VALUE)

    # --- numerically stable softmax in f32; reciprocal on the EUP ------------
    m = jnp.max(s, axis=-1, keepdims=True)
    e = jnp.exp(s - m)
    denom = jnp.sum(e, axis=-1, keepdims=True)
    p = (e * pl.reciprocal(denom, approx=True)).astype(mm_dtype)

    # --- out = p @ v (f32 accumulate) -----------------------------------------
    out = jnp.einsum('bqk,bkh->bqh', p, v,
                     preferred_element_type=jnp.float32)        # (Bb, T, H)
    o_ref[...] = out.astype(o_ref.dtype)


def _pick_batch_block(B, T):
    """Batch elements per grid step.

    Prefer large per-step M = Bb*T (MXU utilization of the projection matmul)
    while still getting >= 2 grid steps when B allows it (DMA/compute overlap,
    and >= 1 step per TensorCore on v7x megacore).
    """
    divisors = [bb for bb in (8, 4, 2, 1) if B % bb == 0]
    for bb in divisors:                       # big M AND >= 2 steps
        if B // bb >= 2 and bb * T >= 1024:
            return bb
    for bb in divisors:                       # otherwise: biggest bb with >= 2 steps
        if B // bb >= 2:
            return bb
    return divisors[0]                        # B == 1 (or no >=2-step option)


def _fuse_weights(wk, wq, wv, scale, dtype):
    """[Wk | Wq*scale | Wv] packed into one slab, padded to a 128-lane multiple.

    The scale fold is done in f32 before the cast to the compute dtype.
    """
    H = wk.shape[1]
    w = jnp.concatenate(
        [wk.astype(jnp.float32),
         wq.astype(jnp.float32) * scale,
         wv.astype(jnp.float32)],
        axis=1,
    )                                                     # (C, 3*H)
    wp = ((3 * H + LANES - 1) // LANES) * LANES
    w = jnp.pad(w, ((0, 0), (0, wp - 3 * H)))
    return w.astype(dtype)


def head_forward(x, wk, wq, wv):
    """x: (B, T, C);  wk/wq/wv: (C, H) (already transposed vs nn.Linear).

    Returns (B, T, H). bf16 inputs hit the native MXU fast path; f32 inputs
    are also supported (matmuls then run in f32).
    """
    B, T, C = x.shape
    Cw, H = wk.shape
    assert Cw == C
    assert T <= BLOCK_SIZE, "sequence length exceeds block_size"

    scale = float(C) ** -0.5                               # module uses C**-0.5
    w_fused = _fuse_weights(wk, wq, wv, scale, x.dtype)    # (C, WP)
    WP = w_fused.shape[1]

    Bb = _pick_batch_block(B, T)
    grid = (B // Bb,)

    kernel = functools.partial(_head_kernel, head_size=H)
    out = pl.pallas_call(
        kernel,
        out_shape=jax.ShapeDtypeStruct((B, T, H), x.dtype),
        grid_spec=pltpu.PrefetchScalarGridSpec(
            num_scalar_prefetch=0,
            grid=grid,
            in_specs=[
                pl.BlockSpec((Bb, T, C), lambda b: (b, 0, 0)),
                pl.BlockSpec((C, WP), lambda b: (0, 0)),   # stays resident
            ],
            # Last dim = H equals the full array dim -> legal block; avoids
            # padded output + wrapper-side slice (less HBM traffic).
            out_specs=pl.BlockSpec((Bb, T, H), lambda b: (b, 0, 0)),
        ),
        compiler_params=pltpu.CompilerParams(
            dimension_semantics=("parallel",),
            # Above v5e's 16 MiB default scoped limit, below v7x's 64 MiB
            # physical VMEM.
            vmem_limit_bytes=48 * 1024 * 1024,
        ),
    )(x, w_fused)

    return out


def head_reference(x, wk, wq, wv):
    B, T, C = x.shape
    k = x @ wk
    q = x @ wq
    v = x @ wv
    wei = (q @ jnp.swapaxes(k, -2, -1)) * (float(C) ** -0.5)
    row = jnp.arange(T)[:, None]
    col = jnp.arange(T)[None, :]
    wei = jnp.where(col <= row, wei, -jnp.inf)
    wei = jax.nn.softmax(wei, axis=-1)
    return wei @ v


if __name__ == "__main__":
    # Small, deterministic example shapes consistent with the module.
    B, T, C, H = 2, 16, N_EMBD, 32

    key = jax.random.PRNGKey(0)
    kx, kk, kq, kv = jax.random.split(key, 4)

    x_f32 = jax.random.normal(kx, (B, T, C), dtype=jnp.float32)

    # nn.Linear default init: U(-1/sqrt(fan_in), 1/sqrt(fan_in)); weights
    # stored here already transposed to (C, H).
    bound = 1.0 / (C ** 0.5)
    wk_f32 = jax.random.uniform(kk, (C, H), jnp.float32, -bound, bound)
    wq_f32 = jax.random.uniform(kq, (C, H), jnp.float32, -bound, bound)
    wv_f32 = jax.random.uniform(kv, (C, H), jnp.float32, -bound, bound)

    # bf16 inputs exercise the native MXU fast path (f32 accumulation inside).
    x = x_f32.astype(jnp.bfloat16)
    wk = wk_f32.astype(jnp.bfloat16)
    wq = wq_f32.astype(jnp.bfloat16)
    wv = wv_f32.astype(jnp.bfloat16)

    # Jit the whole path so the weight fuse/pad is compiled together with the
    # pallas_call (no separate XLA concat op per call).
    out = jax.jit(head_forward)(x, wk, wq, wv)
    out = jax.block_until_ready(out)

    # Reference in f32 on the same (bf16-rounded) values.
    ref = head_reference(x.astype(jnp.float32), wk.astype(jnp.float32),
                         wq.astype(jnp.float32), wv.astype(jnp.float32))

    assert out.shape == (B, T, H)
    assert jnp.allclose(out.astype(jnp.float32), ref, atol=2e-2, rtol=2e-2), \
        "mismatch vs reference"

    print("KERNEL_OK")
</pallas_src>

<mosaic_0001>
module attributes {stable_mosaic.version = 11 : i64} {
  func.func @_head_kernel(%arg0: i32, %arg1: memref<1x16x384xbf16, #tpu.memory_space<vmem>>, %arg2: memref<384x128xbf16, #tpu.memory_space<vmem>>, %arg3: memref<1x16x32xbf16, #tpu.memory_space<vmem>>) attributes {dimension_semantics = [#tpu.dimension_semantics<parallel>], iteration_bounds = array<i64: 2>, scalar_prefetch = 0 : i64, scratch_operands = 0 : i64, tpu.core_type = #tpu.core_type<tc>, window_params = [{transform_indices = @transform_0, window_bounds = array<i64: 1, 16, 384>}, {pipeline_mode = #tpu.pipeline_mode<synchronous>, transform_indices = @transform_1, window_bounds = array<i64: 384, 128>}, {transform_indices = @transform_2, window_bounds = array<i64: 1, 16, 32>}]} {
    %c0 = arith.constant 0 : index
    %c0_0 = arith.constant 0 : index
    %c0_1 = arith.constant 0 : index
    %0 = vector.load %arg1[%c0, %c0_0, %c0_1] : memref<1x16x384xbf16, #tpu.memory_space<vmem>>, vector<1x16x384xbf16>
    %1 = vector.shape_cast %0 : vector<1x16x384xbf16> to vector<16x384xbf16>
    %c0_2 = arith.constant 0 : index
    %c0_3 = arith.constant 0 : index
    %2 = vector.load %arg2[%c0_2, %c0_3] : memref<384x128xbf16, #tpu.memory_space<vmem>>, vector<384x128xbf16>
    %cst = arith.constant dense<0.000000e+00> : vector<16x128xf32>
    %3 = tpu.matmul %1, %2, %cst {dimension_numbers = #tpu.dot_dimension_numbers<[1], [0], [0], [1], [0, 0, 1, 1], [], []>} : vector<16x384xbf16>, vector<384x128xbf16>, vector<16x128xf32> -> vector<16x128xf32>
    %4 = vector.shape_cast %3 : vector<16x128xf32> to vector<1x16x128xf32>
    %5 = vector.extract_strided_slice %4 {offsets = [0, 0, 0], sizes = [1, 16, 32], strides = [1, 1, 1]} : vector<1x16x128xf32> to vector<1x16x32xf32>
    %6 = arith.truncf %5 : vector<1x16x32xf32> to vector<1x16x32xbf16>
    %7 = vector.extract_strided_slice %4 {offsets = [0, 0, 32], sizes = [1, 16, 32], strides = [1, 1, 1]} : vector<1x16x128xf32> to vector<1x16x32xf32>
    %8 = arith.truncf %7 : vector<1x16x32xf32> to vector<1x16x32xbf16>
    %9 = vector.extract_strided_slice %4 {offsets = [0, 0, 64], sizes = [1, 16, 32], strides = [1, 1, 1]} : vector<1x16x128xf32> to vector<1x16x32xf32>
    %10 = arith.truncf %9 : vector<1x16x32xf32> to vector<1x16x32xbf16>
    "tpu.trace_start"() <{level = 10 : i32, message = "bqh,bkh->bqk"}> : () -> ()
    %cst_4 = arith.constant dense<0.000000e+00> : vector<1x16x16xf32>
    %11 = tpu.matmul %8, %6, %cst_4 {dimension_numbers = #tpu.dot_dimension_numbers<[2], [2], [1], [1], [0, 0, 0, 1, 1, 1], [0], [0]>} : vector<1x16x32xbf16>, vector<1x16x32xbf16>, vector<1x16x16xf32> -> vector<1x16x16xf32>
    "tpu.trace_stop"() : () -> ()
    %12 = tpu.iota {dimensions = array<i32: 0>} : vector<16x16xi32>
    %13 = tpu.iota {dimensions = array<i32: 1>} : vector<16x16xi32>
    %14 = arith.cmpi sle, %13, %12 : vector<16x16xi32>
    %15 = vector.shape_cast %14 : vector<16x16xi1> to vector<1x16x16xi1>
    %cst_5 = arith.constant -1.000000e+30 : f32
    %16 = vector.broadcast %cst_5 : f32 to vector<1x16x16xf32>
    %17 = arith.select %15, %11, %16 : vector<1x16x16xi1>, vector<1x16x16xf32>
    %cst_6 = arith.constant dense<0xFF800000> : vector<1x16xf32>
    %18 = vector.multi_reduction <maximumf>, %17, %cst_6 [2] : vector<1x16x16xf32> to vector<1x16xf32>
    %19 = vector.shape_cast %18 : vector<1x16xf32> to vector<1x16x1xf32>
    %20 = vector.broadcast %19 : vector<1x16x1xf32> to vector<1x16x16xf32>
    %21 = arith.subf %17, %20 : vector<1x16x16xf32>
    %22 = math.exp %21 : vector<1x16x16xf32>
    %cst_7 = arith.constant dense<0.000000e+00> : vector<1x16xf32>
    %23 = vector.multi_reduction <add>, %22, %cst_7 [2] : vector<1x16x16xf32> to vector<1x16xf32>
    %24 = vector.shape_cast %23 : vector<1x16xf32> to vector<1x16x1xf32>
    %25 = tpu.reciprocal %24 {approx = true} : vector<1x16x1xf32> -> vector<1x16x1xf32>
    %26 = vector.broadcast %25 : vector<1x16x1xf32> to vector<1x16x16xf32>
    %27 = arith.mulf %22, %26 : vector<1x16x16xf32>
    %28 = arith.truncf %27 : vector<1x16x16xf32> to vector<1x16x16xbf16>
    "tpu.trace_start"() <{level = 10 : i32, message = "bqk,bkh->bqh"}> : () -> ()
    %cst_8 = arith.constant dense<0.000000e+00> : vector<1x16x32xf32>
    %29 = tpu.matmul %28, %10, %cst_8 {dimension_numbers = #tpu.dot_dimension_numbers<[2], [1], [1], [2], [0, 0, 0, 1, 1, 2], [0], [0]>} : vector<1x16x16xbf16>, vector<1x16x32xbf16>, vector<1x16x32xf32> -> vector<1x16x32xf32>
    "tpu.trace_stop"() : () -> ()
    %30 = arith.truncf %29 : vector<1x16x32xf32> to vector<1x16x32xbf16>
    %c0_9 = arith.constant 0 : index
    %c0_10 = arith.constant 0 : index
    %c0_11 = arith.constant 0 : index
    %31 = vector.load %arg3[%c0_9, %c0_10, %c0_11] : memref<1x16x32xbf16, #tpu.memory_space<vmem>>, vector<1x16x32xbf16>
    tpu.vector_store %arg3[%c0_9, %c0_10, %c0_11], %30 {strides = array<i32>} : memref<1x16x32xbf16, #tpu.memory_space<vmem>>, vector<1x16x32xbf16>,
    return
  }
  func.func @transform_0(%arg0: i32) -> (i32, i32, i32) {
    %c0_i32 = arith.constant 0 : i32
    %c0_i32_0 = arith.constant 0 : i32
    %c0_i32_1 = arith.constant 0 : i32
    return %arg0, %c0_i32, %c0_i32_0 : i32, i32, i32
  }
  func.func @transform_1(%arg0: i32) -> (i32, i32) {
    %c0_i32 = arith.constant 0 : i32
    %c0_i32_0 = arith.constant 0 : i32
    %c0_i32_1 = arith.constant 0 : i32
    return %c0_i32, %c0_i32_0 : i32, i32
  }
  func.func @transform_2(%arg0: i32) -> (i32, i32, i32) {
    %c0_i32 = arith.constant 0 : i32
    %c0_i32_0 = arith.constant 0 : i32
    %c0_i32_1 = arith.constant 0 : i32
    return %arg0, %c0_i32, %c0_i32_0 : i32, i32, i32
  }
}

</mosaic_0001>

<llo_original>
// kernel: head_forward.1
$region0: #{head_forward.1}
  #allocation0 [shape = 'u32[]', space=smem, size = 0x4, offset = 0x4, fixed_abs, tag = 'smem constant byte address 0x4 - core index']
  #allocation1 [shape = 'u32[72,128]{1,0:T(1,128)}', space=vmem, size = 0x9000, scoped, tag = 'internal scratch']
  %s0 = inlined_call_operand.vmem [shape: bf16[2,16,384], index: 0, kind: input, shape index: {}]
  %s1 = inlined_call_operand.vmem [shape: bf16[384,128], index: 1, kind: input, shape index: {}]
  %s2 = inlined_call_operand.hbm [shape: bf16[2,16,32], index: 2, kind: output, shape index: {}]
  %s3 = sld [smem:[#allocation0]]
  $region41: #{head_forward.1} parent=0
    _
  %s5 = ssub.s32 1, %s3
  %s6 = scalar_select 0, %s5, %s3
  $region1: #{head_forward.1} parent=0
    #allocation2 [shape = 'u8[8192]{0}', space=vmem, size = 0x2000, scoped, tag = 'output window, operand 0']
    #allocation3 [shape = 's32[2]{0}', space=sflag, size = 0x8, scoped, tag = 'scoped memory for head_forward.1']
    %7 = vsyncpa [#allocation3], 0
    %s8 = scalar_lea.sflag [#allocation3], 1
    %9 = vsyncpa %s8, 0
    loop: start=0, step=1, limit=4
    $region2: #{head_forward.1} parent=1 // loop_pre_header
      _
    $region3: #{head_forward.1} parent=1 // loop_header
      %s11 = sphi 0, %s15
      %p12 = scmp.ge.s32.totalorder %s11, 4
      %s21 = sphi 0, %s23
      %s24 = sphi 0, %s21
      %s25 = sphi 0, %s24
      %s41 = sphi 0, %s25
      %s45 = sphi 0, %s45
      %s47 = sphi 0, %s45
      %s48 = sphi 0, %s47
      %s62 = sphi 0, %s48
      %s68 = sphi 0, %s70
      %s71 = sphi 0, %s68
      %s72 = sphi 0, %s71
      %s88 = sphi 0, %s72
    $region4: #{head_forward.1} parent=1 // loop_header_branch
      %14 = sbr.rel (%p12) target = $region8
    $region5: #{head_forward.1} parent=1 // loop_body
      %s16 = ssub.s32 %s11, 1
      %s17 = ssub.s32 %s11, 2
      %s18 = sadd.s32 %s11, 1
      %s19 = ssub.s32 %s11, %s18
      %p20 = scmp.eq.s32.totalorder %s19, 0
      %s22 = sadd.s32 %s21, 1
      %s23 = scalar_select %p20, %s21, %s22
      %p26 = pneg %p20
      %p27 = scmp.eq.s32.totalorder %s11, 1
      %p28 = por %p26, %p27
      %p29 = scmp.ne.s32.totalorder %s21, %s24
      %p30 = scmp.eq.s32.totalorder %s11, 0
      %p31 = por %p29, %p30
      %p32 = scmp.ne.s32.totalorder %s21, %s24
      %p33 = scmp.eq.s32.totalorder %s16, 1
      %p34 = por %p32, %p33
      %p35 = scmp.ne.s32.totalorder %s24, %s25
      %p36 = scmp.eq.s32.totalorder %s16, 0
      %p37 = por %p35, %p36
      %p38 = scmp.ne.s32.totalorder %s24, %s25
      %p39 = scmp.eq.s32.totalorder %s17, 1
      %p40 = por %p38, %p39
      %p42 = scmp.ne.s32.totalorder %s25, %s41
      %p43 = scmp.eq.s32.totalorder %s17, 0
      %p44 = por %p42, %p43
      %s46 = sadd.s32 %s45, 1
      %p49 = scmp.eq.s32.totalorder %s11, 1
      %p50 = scmp.ne.s32.totalorder %s45, %s47
      %p51 = scmp.eq.s32.totalorder %s11, 0
      %p52 = por %p50, %p51
      %p53 = scmp.ne.s32.totalorder %s45, %s47
      %p54 = scmp.eq.s32.totalorder %s16, 1
      %p55 = por %p53, %p54
      %p56 = scmp.ne.s32.totalorder %s47, %s48
      %p57 = scmp.eq.s32.totalorder %s16, 0
      %p58 = por %p56, %p57
      %p59 = scmp.ne.s32.totalorder %s47, %s48
      %p60 = scmp.eq.s32.totalorder %s17, 1
      %p61 = por %p59, %p60
      %p63 = scmp.ne.s32.totalorder %s48, %s62
      %p64 = scmp.eq.s32.totalorder %s17, 0
      %p65 = por %p63, %p64
      %s66 = ssub.s32 %s11, %s18
      %p67 = scmp.eq.s32.totalorder %s66, 0
      %s69 = sadd.s32 %s68, 1
      %s70 = scalar_select %p67, %s68, %s69
      %p73 = pneg %p67
      %p74 = scmp.eq.s32.totalorder %s11, 1
      %p75 = por %p73, %p74
      %p76 = scmp.ne.s32.totalorder %s68, %s71
      %p77 = scmp.eq.s32.totalorder %s11, 0
      %p78 = por %p76, %p77
      %p79 = scmp.ne.s32.totalorder %s68, %s71
      %p80 = scmp.eq.s32.totalorder %s16, 1
      %p81 = por %p79, %p80
      %p82 = scmp.ne.s32.totalorder %s71, %s72
      %p83 = scmp.eq.s32.totalorder %s16, 0
      %p84 = por %p82, %p83
      %p85 = scmp.ne.s32.totalorder %s71, %s72
      %p86 = scmp.eq.s32.totalorder %s17, 1
      %p87 = por %p85, %p86
      %p89 = scmp.ne.s32.totalorder %s72, %s88
      %p90 = scmp.eq.s32.totalorder %s17, 0
      %p91 = por %p89, %p90
      %p92 = scmp.le.s32.totalorder 1, %s11
      %p93 = scmp.lt.s32.totalorder %s11, 3
      %p94 = pnand %p92, %p93
      %p95 = pneg %p94
      // Predicated region
      $region9: #{head_forward.1} parent=5 // pred_check
        _
      $region10: #{head_forward.1} parent=5 // pred_check_branch
        %97 = sbr.rel (%p94) target = $region12
      $region11: #{head_forward.1} parent=5 // pred_region
        %s98 = ssub.s32 %s11, 1
        // Predicated region
        $region13: #{head_forward.1} parent=11 // pred_check
          %p99 = pneg %p58
        $region14: #{head_forward.1} parent=11 // pred_check_branch
          %101 = sbr.rel (%p99) target = $region16
        $region15: #{head_forward.1} parent=11 // pred_region
          _
        $region16: #{head_forward.1} parent=11 // pred_fallthru
          _
      $region12: #{head_forward.1} parent=5 // pred_fallthru
        _
      %p102 = scmp.lt.s32.totalorder %s11, 2
      // Predicated region
      $region17: #{head_forward.1} parent=5 // pred_check
        %p103 = pneg %p102
      $region18: #{head_forward.1} parent=5 // pred_check_branch
        %105 = sbr.rel (%p103) target = $region20
      $region19: #{head_forward.1} parent=5 // pred_region
        // Predicated region
        $region21: #{head_forward.1} parent=19 // pred_check
          %p106 = pneg %p31
        $region22: #{head_forward.1} parent=19 // pred_check_branch
          %108 = sbr.rel (%p106) target = $region24
        $region23: #{head_forward.1} parent=19 // pred_region
          %p109 = scmp.lt.s32.totalorder %s11, 1
          %s110 = scalar_select %p109, %s11, 1
          %s111 = smul.addr %s110, 6
          %s112 = smul.addr %s111, 4
          %s113 = scalar_lea.vmem %s0, %s112
        $region24: #{head_forward.1} parent=19 // pred_fallthru
          _
      $region20: #{head_forward.1} parent=5 // pred_fallthru
        _
      %p114 = scmp.le.s32.totalorder 1, %s11
      %p115 = scmp.lt.s32.totalorder %s11, 3
      %p116 = pnand %p114, %p115
      %p117 = pneg %p116
      // Predicated region
      $region25: #{head_forward.1} parent=5 // pred_check
        _
      $region26: #{head_forward.1} parent=5 // pred_check_branch
        %119 = sbr.rel (%p116) target = $region28
      $region27: #{head_forward.1} parent=5 // pred_region
        %s120 = ssub.s32 %s11, 1
        %p121 = scmp.lt.s32.totalorder %s16, 1
        %s122 = scalar_select %p121, %s16, 1
        %s123 = smul.addr %s122, 6
        %s124 = smul.addr %s123, 4
        %s125 = scalar_lea.vmem %s0, %s124
        %p126 = pneg %p37
        %p127 = pneg %p34
        %p128 = pneg %p58
        %p129 = pneg %p55
        %p130 = pneg %p84
        %p131 = pneg %p81
        %s132 = sand.u32 %s71, 1
        %s133 = scalar_lea.sflag [#allocation3], %s132
        %s134 = sand.u32 %s71, 1
        %s135 = smul.addr %s134, 8
        %s136 = scalar_lea.vmem [#allocation2], %s135
        %p137 = scmp.lt.s32.totalorder %s16, 1
        %s138 = scalar_select %p137, %s16, 1
        %s139 = smul.addr %s138, 6
        %s140 = smul.addr %s139, 4
        %s141 = scalar_lea.vmem %s0, %s140
        %v143 = vld [vmem:[%s141] sm:$0xff]
        %v144 = vld [vmem:[%s141 + $0x8] sm:$0xf]
        %v145 = vld [vmem:[%s141 + $0xc] sm:$0xff]
        %v146 = vld [vmem:[%s141 + $0x14] sm:$0xf]
        %v147 = vld [vmem:[%s1] sm:$0xf]
        %v148 = vld [vmem:[%s1 + $0x4] sm:$0xf]
        %v149 = vld [vmem:[%s1 + $0x8] sm:$0xf]
        %v150 = vld [vmem:[%s1 + $0xc] sm:$0xf]
        %v151 = vld [vmem:[%s1 + $0x10] sm:$0xf]
        %v152 = vld [vmem:[%s1 + $0x14] sm:$0xf]
        %v153 = vld [vmem:[%s1 + $0x18] sm:$0xf]
        %v154 = vld [vmem:[%s1 + $0x1c] sm:$0xf]
        %v155 = vld [vmem:[%s1 + $0x20] sm:$0xf]
        %v156 = vld [vmem:[%s1 + $0x24] sm:$0xf]
        %v157 = vld [vmem:[%s1 + $0x28] sm:$0xf]
        %v158 = vld [vmem:[%s1 + $0x2c] sm:$0xf]
        %v159 = vld [vmem:[%s1 + $0x30] sm:$0xf]
        %v160 = vld [vmem:[%s1 + $0x34] sm:$0xf]
        %v161 = vld [vmem:[%s1 + $0x38] sm:$0xf]
        %v162 = vld [vmem:[%s1 + $0x3c] sm:$0xf]
        %v163 = vld [vmem:[%s1 + $0x40] sm:$0xf]
        %v164 = vld [vmem:[%s1 + $0x44] sm:$0xf]
        %v165 = vld [vmem:[%s1 + $0x48] sm:$0xf]
        %v166 = vld [vmem:[%s1 + $0x4c] sm:$0xf]
        %v167 = vld [vmem:[%s1 + $0x50] sm:$0xf]
        %v168 = vld [vmem:[%s1 + $0x54] sm:$0xf]
        %v169 = vld [vmem:[%s1 + $0x58] sm:$0xf]
        %v170 = vld [vmem:[%s1 + $0x5c] sm:$0xf]
        %v171 = vld [vmem:[%s1 + $0x60] sm:$0xf]
        %v172 = vld [vmem:[%s1 + $0x64] sm:$0xf]
        %v173 = vld [vmem:[%s1 + $0x68] sm:$0xf]
        %v174 = vld [vmem:[%s1 + $0x6c] sm:$0xf]
        %v175 = vld [vmem:[%s1 + $0x70] sm:$0xf]
        %v176 = vld [vmem:[%s1 + $0x74] sm:$0xf]
        %v177 = vld [vmem:[%s1 + $0x78] sm:$0xf]
        %v178 = vld [vmem:[%s1 + $0x7c] sm:$0xf]
        %v179 = vld [vmem:[%s1 + $0x80] sm:$0xf]
        %v180 = vld [vmem:[%s1 + $0x84] sm:$0xf]
        %v181 = vld [vmem:[%s1 + $0x88] sm:$0xf]
        %v182 = vld [vmem:[%s1 + $0x8c] sm:$0xf]
        %v183 = vld [vmem:[%s1 + $0x90] sm:$0xf]
        %v184 = vld [vmem:[%s1 + $0x94] sm:$0xf]
        %v185 = vld [vmem:[%s1 + $0x98] sm:$0xf]
        %v186 = vld [vmem:[%s1 + $0x9c] sm:$0xf]
        %v187 = vld [vmem:[%s1 + $0xa0] sm:$0xf]
        %v188 = vld [vmem:[%s1 + $0xa4] sm:$0xf]
        %v189 = vld [vmem:[%s1 + $0xa8] sm:$0xf]
        %v190 = vld [vmem:[%s1 + $0xac] sm:$0xf]
        %v191 = vld [vmem:[%s1 + $0xb0] sm:$0xf]
        %v192 = vld [vmem:[%s1 + $0xb4] sm:$0xf]
        %v193 = vld [vmem:[%s1 + $0xb8] sm:$0xf]
        %v194 = vld [vmem:[%s1 + $0xbc] sm:$0xf]
        %v199 = vunpack.c.l.b16 %v143
        %v200 = vunpack.c.h.b16 %v143
        %v201 = vunpack.c.l.b16 %v144
        %v202 = vunpack.c.l.b16 %v145
        %v203 = vunpack.c.h.b16 %v145
        %v204 = vunpack.c.l.b16 %v146
        %v205 = vpack.c.b16 %v202, %v199
        %v206 = vpack.c.b16 %v203, %v200
        %v207 = vpack.c.b16 %v204, %v201
        %v259 = vunpack.c.l.b16 %v147
        %v260 = vunpack.c.l.b16 %v148
        %v261 = vunpack.c.l.b16 %v149
        %v262 = vunpack.c.l.b16 %v150
        %v263 = vunpack.c.l.b16 %v151
        %v264 = vunpack.c.l.b16 %v152
        %v265 = vunpack.c.l.b16 %v153
        %v266 = vunpack.c.l.b16 %v154
        %v267 = vunpack.c.l.b16 %v155
        %v268 = vunpack.c.l.b16 %v156
        %v269 = vunpack.c.l.b16 %v157
        %v270 = vunpack.c.l.b16 %v158
        %v271 = vunpack.c.l.b16 %v159
        %v272 = vunpack.c.l.b16 %v160
        %v273 = vunpack.c.l.b16 %v161
        %v274 = vunpack.c.l.b16 %v162
        %v275 = vunpack.c.l.b16 %v163
        %v276 = vunpack.c.l.b16 %v164
        %v277 = vunpack.c.l.b16 %v165
        %v278 = vunpack.c.l.b16 %v166
        %v279 = vunpack.c.l.b16 %v167
        %v280 = vunpack.c.l.b16 %v168
        %v281 = vunpack.c.l.b16 %v169
        %v282 = vunpack.c.l.b16 %v170
        %v283 = vunpack.c.l.b16 %v171
        %v284 = vunpack.c.l.b16 %v172
        %v285 = vunpack.c.l.b16 %v173
        %v286 = vunpack.c.l.b16 %v174
        %v287 = vunpack.c.l.b16 %v175
        %v288 = vunpack.c.l.b16 %v176
        %v289 = vunpack.c.l.b16 %v177
        %v290 = vunpack.c.l.b16 %v178
        %v291 = vunpack.c.l.b16 %v179
        %v292 = vunpack.c.l.b16 %v180
        %v293 = vunpack.c.l.b16 %v181
        %v294 = vunpack.c.l.b16 %v182
        %v295 = vunpack.c.l.b16 %v183
        %v296 = vunpack.c.l.b16 %v184
        %v297 = vunpack.c.l.b16 %v185
        %v298 = vunpack.c.l.b16 %v186
        %v299 = vunpack.c.l.b16 %v187
        %v300 = vunpack.c.l.b16 %v188
        %v301 = vunpack.c.l.b16 %v189
        %v302 = vunpack.c.l.b16 %v190
        %v303 = vunpack.c.l.b16 %v191
        %v304 = vunpack.c.l.b16 %v192
        %v305 = vunpack.c.l.b16 %v193
        %v306 = vunpack.c.l.b16 %v194
        %v307 = vpack.c.b16 %v260, %v259
        %v308 = vpack.c.b16 %v262, %v261
        %v309 = vpack.c.b16 %v264, %v263
        %v310 = vpack.c.b16 %v266, %v265
        %v311 = vpack.c.b16 %v268, %v267
        %v312 = vpack.c.b16 %v270, %v269
        %v313 = vpack.c.b16 %v272, %v271
        %v314 = vpack.c.b16 %v274, %v273
        %v315 = vpack.c.b16 %v276, %v275
        %v316 = vpack.c.b16 %v278, %v277
        %v317 = vpack.c.b16 %v280, %v279
        %v318 = vpack.c.b16 %v282, %v281
        %v319 = vpack.c.b16 %v284, %v283
        %v320 = vpack.c.b16 %v286, %v285
        %v321 = vpack.c.b16 %v288, %v287
        %v322 = vpack.c.b16 %v290, %v289
        %v323 = vpack.c.b16 %v292, %v291
        %v324 = vpack.c.b16 %v294, %v293
        %v325 = vpack.c.b16 %v296, %v295
        %v326 = vpack.c.b16 %v298, %v297
        %v327 = vpack.c.b16 %v300, %v299
        %v328 = vpack.c.b16 %v302, %v301
        %v329 = vpack.c.b16 %v304, %v303
        %v330 = vpack.c.b16 %v306, %v305
        %355 = vmatpush.bf16.msra.mxu0 %v314
        %356 = vmatpush.bf16.msra.mxu0 %v313
        %357 = vmatpush.bf16.msra.mxu0 %v312
        %358 = vmatpush.bf16.msra.mxu0 %v311
        %359 = vmatpush.bf16.msra.mxu0 %v310
        %360 = vmatpush.bf16.msra.mxu0 %v309
        %361 = vmatpush.bf16.msra.mxu0 %v308
        %362 = vmatpush.bf16.msra.mxu0 %v307
        %363 = vmatmul.bf16.gmra.mxu0 %v205
        %v364 = vpop.f32.mrf.mxu0
        %v365 = vadd.f32 0.0, %v364
        %v366 = vpop.f32.mrf.mxu0
        %v367 = vadd.f32 0.0, %v366
        %368 = vdwg.mxu0
        %369 = vmatpush.bf16.msra.mxu0 %v322
        %370 = vmatpush.bf16.msra.mxu0 %v321
        %371 = vmatpush.bf16.msra.mxu0 %v320
        %372 = vmatpush.bf16.msra.mxu0 %v319
        %373 = vmatpush.bf16.msra.mxu0 %v318
        %374 = vmatpush.bf16.msra.mxu0 %v317
        %375 = vmatpush.bf16.msra.mxu0 %v316
        %376 = vmatpush.bf16.msra.mxu0 %v315
        %377 = vmatmul.bf16.gmra.mxu0 %v206
        %v378 = vpop.f32.mrf.mxu0
        %v379 = vadd.f32 %v365, %v378
        %v380 = vpop.f32.mrf.mxu0
        %v381 = vadd.f32 %v367, %v380
        %382 = vdwg.mxu0
        %383 = vmatpush.bf16.msra.mxu0 %v330
        %384 = vmatpush.bf16.msra.mxu0 %v329
        %385 = vmatpush.bf16.msra.mxu0 %v328
        %386 = vmatpush.bf16.msra.mxu0 %v327
        %387 = vmatpush.bf16.msra.mxu0 %v326
        %388 = vmatpush.bf16.msra.mxu0 %v325
        %389 = vmatpush.bf16.msra.mxu0 %v324
        %390 = vmatpush.bf16.msra.mxu0 %v323
        %391 = vmatmul.bf16.gmra.mxu0 %v207
        %v392 = vpop.f32.mrf.mxu0
        %v393 = vadd.f32 %v379, %v392
        %v394 = vpop.f32.mrf.mxu0
        %v395 = vadd.f32 %v381, %v394
        %396 = vdwg.mxu0
        %v397 = vpack.c.bf16 %v393, %v393
        %v398 = vpack.c.bf16 %v395, %v395
        %v401 = vunpack.c.l.b16 %v397
        %v402 = vunpack.c.l.b16 %v398
        %v403 = vpack.c.b16 %v402, %v401
        %404 = vrot.lane.b32.xlu0 %v403, 96
        %v405 = vpop.permute.xlu0 %404
        %vm406 = vcmask 261120
        %v408 = vsel %vm406, %v405, 0
        %v411 = vsel %vm406, %v403, 0
        %413 = vmatpush.bf16.xpose.msra.mxu0 0
        %414 = vmatpush.bf16.xpose.msra.mxu0 0
        %415 = vmatpush.bf16.xpose.msra.mxu0 0
        %416 = vmatpush.bf16.xpose.msra.mxu0 0
        %417 = vmatpush.bf16.xpose.msra.mxu0 0
        %418 = vmatpush.bf16.xpose.msra.mxu0 0
        %419 = vmatpush.bf16.xpose.msra.mxu0 0
        %420 = vmatpush.bf16.xpose.msra.mxu0 %v411
        %421 = vmatmul.bf16.gmra.mxu0 %v408
        %v422 = vpop.f32.mrf.mxu0
        %v423 = vadd.f32 0.0, %v422
        %v424 = vpop.f32.mrf.mxu0
        %v425 = vadd.f32 0.0, %v424
        %426 = vdwg.mxu0
        %v427 = vlaneseq
        %v428 = vshrl.u32 %v427, 7
        %v429 = vadd.s32 %v428, 8
        %v430 = vlaneseq
        %v431 = vand.u32 %v430, 127
        %vm432 = vcmp.le.s32.totalorder %v431, %v428
        %vm433 = vcmp.le.s32.totalorder %v431, %v429
        %v434 = vsel %vm432, %v423, -1e+30
        %v435 = vsel %vm433, %v425, -1e+30
        %vm436 = vcmask 130048
        %v437 = vsel %vm436, %v434, -inf
        %438 = vmax.xlane.f32.xlu0 %v437
        %v439 = vpop.xlane.xlu0 %438
        %v440 = vsel %vm436, %v435, -inf
        %441 = vmax.xlane.f32.xlu0 %v440
        %v442 = vpop.xlane.xlu0 %441
        %v443 = vsub.f32 %v434, %v439
        %v444 = vsub.f32 %v435, %v442
        %v445 = vmul.f32 %v443, 1.442695
        %v446 = vpow.pop %v445
        %v447 = vmul.f32 %v444, 1.442695
        %v448 = vpow.pop %v447
        %v449 = vsel %vm436, %v446, 0.0
        %450 = vadd.xlane.f32.xlu0 %v449
        %v451 = vpop.xlane.xlu0 %450
        %v452 = vsel %vm436, %v448, 0.0
        %453 = vadd.xlane.f32.xlu0 %v452
        %v454 = vpop.xlane.xlu0 %453
        %v455 = vrcp.pop %v451
        %v456 = vrcp.pop %v454
        %v457 = vmul.f32 %v446, %v455
        %v458 = vmul.f32 %v448, %v456
        %v459 = vpack.c.bf16 %v457, %v457
        %v460 = vpack.c.bf16 %v458, %v458
        %v463 = vunpack.c.l.b16 %v459
        %v464 = vunpack.c.l.b16 %v460
        %v465 = vpack.c.b16 %v464, %v463
        %466 = vrot.lane.b32.xlu0 %v403, 64
        %v467 = vpop.permute.xlu0 %466
        %v470 = vsel %vm436, %v465, 0
        %472 = vmatpush.bf16.msra.mxu0 0
        %473 = vmatpush.bf16.msra.mxu0 0
        %474 = vmatpush.bf16.msra.mxu0 0
        %475 = vmatpush.bf16.msra.mxu0 0
        %476 = vmatpush.bf16.msra.mxu0 0
        %477 = vmatpush.bf16.msra.mxu0 0
        %478 = vmatpush.bf16.msra.mxu0 0
        %479 = vmatpush.bf16.msra.mxu0 %v467
        %480 = vmatmul.bf16.gmra.mxu0 %v470
        %v481 = vpop.f32.mrf.mxu0
        %v482 = vadd.f32 0.0, %v481
        %v483 = vpop.f32.mrf.mxu0
        %v484 = vadd.f32 0.0, %v483
        %485 = vdwg.mxu0
        %v486 = vpack.c.bf16 %v482, %v482
        %v487 = vpack.c.bf16 %v484, %v484
        %vm488 = vcmask 257024
        %489 = vst.msk [vmem:[%s136] sm:$0xf] %vm488, %v486
        %490 = vst.msk [vmem:[%s136 + $0x4] sm:$0xf] %vm488, %v487
        %s491 = sand.u32 %s71, 1
        %s492 = scalar_lea.sflag [#allocation3], %s491
        %s493 = sand.u32 %s71, 1
        %s494 = smul.addr %s493, 8
        %s495 = scalar_lea.vmem [#allocation2], %s494
        // Predicated region
        $region29: #{head_forward.1} parent=27 // pred_check
          %p496 = pneg %p81
        $region30: #{head_forward.1} parent=27 // pred_check_branch
          %498 = sbr.rel (%p496) target = $region32
        $region31: #{head_forward.1} parent=27 // pred_region
          %500 = vsyncadd %s492, 0
          %s501 = smul.addr %s16, 2
          %s502 = smul.addr %s501, 4
          %s503 = scalar_lea.hbm %s2, %s502
          %s504 = sshll.u32 %s495, 4
          %s505 = int_to_ptr.vmem [resolvable:$true] %s504
          %s506 = sshll.u32 %s503, 4
          %s507 = int_to_ptr.hbm [resolvable:$true] %s506
          %512 = dma.vmem_to_hbm [thread:$0]  %s505, 128, %s507, %s492, 64, 64, 4
        $region32: #{head_forward.1} parent=27 // pred_fallthru
          _
      $region28: #{head_forward.1} parent=5 // pred_fallthru
        _
      %p513 = scmp.le.s32.totalorder 2, %s11
      // Predicated region
      $region33: #{head_forward.1} parent=5 // pred_check
        %p514 = pneg %p513
      $region34: #{head_forward.1} parent=5 // pred_check_branch
        %516 = sbr.rel (%p514) target = $region36
      $region35: #{head_forward.1} parent=5 // pred_region
        %s517 = ssub.s32 %s11, 2
        // Predicated region
        $region37: #{head_forward.1} parent=35 // pred_check
          %p518 = pneg %p87
        $region38: #{head_forward.1} parent=35 // pred_check_branch
          %520 = sbr.rel (%p518) target = $region40
        $region39: #{head_forward.1} parent=35 // pred_region
          %s521 = sand.u32 %s72, 1
          %s522 = scalar_lea.sflag [#allocation3], %s521
          %s523 = sand.u32 %s72, 1
          %s524 = smul.addr %s523, 8
          %s525 = scalar_lea.vmem [#allocation2], %s524
          %527 = dma.done %s522, 128
        $region40: #{head_forward.1} parent=35 // pred_fallthru
          _
      $region36: #{head_forward.1} parent=5 // pred_fallthru
        _
    $region6: #{head_forward.1} parent=1 // loop_footer
      %s15 = sadd.s32 1, %s11
    $region7: #{head_forward.1} parent=1 // loop_footer_branch
      %10 = sbr.rel target = $region3
    $region8: #{head_forward.1} parent=1 // loop_exit
      _
    %528 = vsyncpa [#allocation3], 1
    %s529 = scalar_lea.sflag [#allocation3], 1
    %530 = vsyncpa %s529, 1

</llo_original>
